<compile_context>
chip_gen: v7x
topology: tpu7x:2x2x1
jax: 0.10.0
libtpu: 0.0.40
codegen_flags: <defaults>
</compile_context>

<pallas_src>
import jax
import jax.numpy as jnp
from jax.experimental import pallas as pl
from jax.experimental.pallas import tpu as pltpu


def mlp_kernel(xt_ref, w1_ref, b1_ref, w2_ref, b2_ref, w3_ref, ot_ref):
    """One batch tile in transposed layout: every operand is (features, batch_tile).

    Matmuls hit the MXU with f32 accumulation; bias-add + tanh stay in f32
    (v5e-safe).  The batch tile sits on the 128-lane axis, so the output store
    is lane-dense (unmasked vst).
    """
    cdt = w1_ref.dtype  # matmul-input dtype (f32, or bf16 when compute_dtype=bf16)

    # layer 1: Linear + Tanh       (h0, dim) @ (dim, TB) -> (h0, TB)
    h = jnp.dot(w1_ref[...], xt_ref[...], preferred_element_type=jnp.float32)
    h = jnp.tanh(h + b1_ref[...])

    # layer 2: Linear + Tanh       (h1, h0) @ (h0, TB) -> (h1, TB)
    h = jnp.dot(w2_ref[...], h.astype(cdt), preferred_element_type=jnp.float32)
    h = jnp.tanh(h + b2_ref[...])

    # output layer, no bias        (dim, h1) @ (h1, TB) -> (dim, TB)
    out = jnp.dot(w3_ref[...], h.astype(cdt), preferred_element_type=jnp.float32)
    ot_ref[...] = out.astype(ot_ref.dtype)


def _pick_tile(batch, block_b):
    """Choose a lane-aligned batch tile and grid size.

    - tile is a multiple of 128 (lane width), capped at `block_b`
      (default 512 keeps the live set inside the 64-vreg file; >1024 spills);
    - prefer >=2 grid blocks when the lane-rounded batch allows it so v7x's two
      TensorCores both get work from the "parallel" grid axis.
    Returns (tile, n_blocks, padded_batch).
    """
    b128 = pl.cdiv(batch, 128) * 128
    tb = max(128, min(int(block_b), b128))
    tb = (tb // 128) * 128
    if b128 // tb < 2 and b128 >= 256:
        tb = max(128, (b128 // 2 // 128) * 128)
    n_blocks = pl.cdiv(b128, tb)
    return tb, n_blocks, n_blocks * tb


def mlp_forward(t, x, w1, b1, w2, b2, w3, *, block_b=512,
                compute_dtype=jnp.float32,
                x_is_transposed=False, return_transposed=False):
    """Pallas-fused MLP forward. `t` is ignored, matching the PyTorch module.

    x : (B, dim)  (or (dim, B) when x_is_transposed=True, e.g. for chained
                   ODE-RHS evaluations that keep the kernel layout end-to-end)
    w1: (h0, dim), b1: (h0,)   -- PyTorch nn.Linear weight layout (out, in)
    w2: (h1, h0), b2: (h1,)
    w3: (dim, h1)              -- final layer, bias=False
    """
    del t  # the ODE time is unused, exactly as in the PyTorch forward

    if x_is_transposed:
        dim, B = x.shape
        xt = x
    else:
        B, dim = x.shape
        xt = x.T                                        # (dim, B)
    h0 = w1.shape[0]
    h1 = w2.shape[0]

    tb, n_blocks, b_pad = _pick_tile(B, block_b)

    # Transpose/cast/(optional) pad back-to-back so XLA fuses them into one
    # HBM pass; skip the pad entirely when B is already a tile multiple.
    xt = xt.astype(compute_dtype)
    if b_pad != B:
        xt = jnp.pad(xt, ((0, 0), (0, b_pad - B)))

    w1c = w1.astype(compute_dtype)
    w2c = w2.astype(compute_dtype)
    w3c = w3.astype(compute_dtype)
    b1c = b1.reshape(h0, 1).astype(jnp.float32)          # lane-broadcast biases
    b2c = b2.reshape(h1, 1).astype(jnp.float32)

    # Constant index_map => weights/biases are DMA'd once and stay VMEM-resident
    # across the (parallel) batch grid axis.
    resident = lambda shape: pl.BlockSpec(shape, lambda i: (0, 0))

    out_t = pl.pallas_call(
        mlp_kernel,
        out_shape=jax.ShapeDtypeStruct((dim, b_pad), x.dtype),
        grid=(n_blocks,),
        in_specs=[
            pl.BlockSpec((dim, tb), lambda i: (0, i)),   # x^T batch tile
            resident((h0, dim)),                         # W1
            resident((h0, 1)),                           # b1
            resident((h1, h0)),                          # W2
            resident((h1, 1)),                           # b2
            resident((dim, h1)),                         # W3
        ],
        out_specs=pl.BlockSpec((dim, tb), lambda i: (0, i)),
        compiler_params=pltpu.CompilerParams(
            dimension_semantics=("parallel",)),
    )(xt, w1c, b1c, w2c, b2c, w3c)

    out_t = out_t[:, :B]
    if return_transposed:
        return out_t                                     # (dim, B)
    return out_t.T                                       # (B, dim), PyTorch layout


def init_params(key, dim, hlayers, init_b):
    """Deterministic init mimicking weight.data.uniform_(-b, b), PyTorch layout."""
    h0, h1 = hlayers
    k1, k2, k3, k4, k5 = jax.random.split(key, 5)
    u = lambda k, shape: jax.random.uniform(k, shape, jnp.float32, -init_b, init_b)
    w1 = u(k1, (h0, dim))
    b1 = u(k2, (h0,))
    w2 = u(k3, (h1, h0))
    b2 = u(k4, (h1,))
    w3 = u(k5, (dim, h1))      # final layer: bias=False
    return w1, b1, w2, b2, w3


if __name__ == "__main__":
    # params = {'dim': 16, 'hlayers': [32, 32],
    #           'hactivations': ['Tanh()', 'Tanh()'], 'init_b': 0.1}
    dim = 16
    hlayers = [32, 32]
    init_b = 0.1

    key = jax.random.PRNGKey(0)
    kx, kp = jax.random.split(key)
    w1, b1, w2, b2, w3 = init_params(kp, dim, hlayers, init_b)
    t = jnp.float32(0.0)  # ignored, as in the PyTorch forward

    def ref_fn(x):
        h = jnp.tanh(x @ w1.T + b1)
        h = jnp.tanh(h @ w2.T + b2)
        return h @ w3.T

    # Batched case: 256 rows -> two 128-wide lane-dense tiles over the
    # "parallel" grid axis (so both v7x TensorCores get a block).
    x_big = jax.random.normal(kx, (256, dim), dtype=jnp.float32)
    out_big = jax.block_until_ready(mlp_forward(t, x_big, w1, b1, w2, b2, w3))
    assert out_big.shape == (256, dim)
    assert jnp.allclose(out_big, ref_fn(x_big), atol=1e-5, rtol=1e-5)

    # Tiny case (original batch=8): padded up to one 128-wide tile, then sliced.
    x_small = x_big[:8]
    out_small = jax.block_until_ready(mlp_forward(t, x_small, w1, b1, w2, b2, w3))
    assert out_small.shape == (8, dim)
    assert jnp.allclose(out_small, ref_fn(x_small), atol=1e-5, rtol=1e-5)

    # bf16 MXU-input path (bandwidth win); looser tolerance is expected bf16
    # rounding, not a kernel bug.  Also exercises transposed in/out layout,
    # the mode a chained ODE solver would use to amortize the wrapper passes.
    out_bf16_t = jax.block_until_ready(
        mlp_forward(t, x_big.T, w1, b1, w2, b2, w3,
                    compute_dtype=jnp.bfloat16,
                    x_is_transposed=True, return_transposed=True))
    assert out_bf16_t.shape == (dim, 256)
    assert jnp.allclose(out_bf16_t.T, ref_fn(x_big), atol=2e-2, rtol=2e-2)

    print("KERNEL_OK")
</pallas_src>

<mosaic_0001>
module attributes {stable_mosaic.version = 11 : i64} {
  func.func @mlp_kernel(%arg0: i32, %arg1: memref<16x128xf32, #tpu.memory_space<vmem>>, %arg2: memref<32x16xf32, #tpu.memory_space<vmem>>, %arg3: memref<32x1xf32, #tpu.memory_space<vmem>>, %arg4: memref<32x32xf32, #tpu.memory_space<vmem>>, %arg5: memref<32x1xf32, #tpu.memory_space<vmem>>, %arg6: memref<16x32xf32, #tpu.memory_space<vmem>>, %arg7: memref<16x128xf32, #tpu.memory_space<vmem>>) attributes {dimension_semantics = [#tpu.dimension_semantics<parallel>], iteration_bounds = array<i64: 2>, scalar_prefetch = 0 : i64, scratch_operands = 0 : i64, tpu.core_type = #tpu.core_type<tc>, window_params = [{transform_indices = @transform_0, window_bounds = array<i64: 16, 128>}, {pipeline_mode = #tpu.pipeline_mode<synchronous>, transform_indices = @transform_1, window_bounds = array<i64: 32, 16>}, {pipeline_mode = #tpu.pipeline_mode<synchronous>, transform_indices = @transform_2, window_bounds = array<i64: 32, 1>}, {pipeline_mode = #tpu.pipeline_mode<synchronous>, transform_indices = @transform_3, window_bounds = array<i64: 32, 32>}, {pipeline_mode = #tpu.pipeline_mode<synchronous>, transform_indices = @transform_4, window_bounds = array<i64: 32, 1>}, {pipeline_mode = #tpu.pipeline_mode<synchronous>, transform_indices = @transform_5, window_bounds = array<i64: 16, 32>}, {transform_indices = @transform_6, window_bounds = array<i64: 16, 128>}]} {
    %c0 = arith.constant 0 : index
    %c0_0 = arith.constant 0 : index
    %0 = vector.load %arg2[%c0, %c0_0] : memref<32x16xf32, #tpu.memory_space<vmem>>, vector<32x16xf32>
    %c0_1 = arith.constant 0 : index
    %c0_2 = arith.constant 0 : index
    %1 = vector.load %arg1[%c0_1, %c0_2] : memref<16x128xf32, #tpu.memory_space<vmem>>, vector<16x128xf32>
    %cst = arith.constant dense<0.000000e+00> : vector<32x128xf32>
    %2 = tpu.matmul %0, %1, %cst {dimension_numbers = #tpu.dot_dimension_numbers<[1], [0], [0], [1], [0, 0, 1, 1], [], []>} : vector<32x16xf32>, vector<16x128xf32>, vector<32x128xf32> -> vector<32x128xf32>
    %c0_3 = arith.constant 0 : index
    %c0_4 = arith.constant 0 : index
    %3 = vector.load %arg3[%c0_3, %c0_4] : memref<32x1xf32, #tpu.memory_space<vmem>>, vector<32x1xf32>
    %4 = vector.broadcast %3 : vector<32x1xf32> to vector<32x128xf32>
    %5 = arith.addf %2, %4 : vector<32x128xf32>
    %6 = math.tanh %5 : vector<32x128xf32>
    %c0_5 = arith.constant 0 : index
    %c0_6 = arith.constant 0 : index
    %7 = vector.load %arg4[%c0_5, %c0_6] : memref<32x32xf32, #tpu.memory_space<vmem>>, vector<32x32xf32>
    %cst_7 = arith.constant dense<0.000000e+00> : vector<32x128xf32>
    %8 = tpu.matmul %7, %6, %cst_7 {dimension_numbers = #tpu.dot_dimension_numbers<[1], [0], [0], [1], [0, 0, 1, 1], [], []>} : vector<32x32xf32>, vector<32x128xf32>, vector<32x128xf32> -> vector<32x128xf32>
    %c0_8 = arith.constant 0 : index
    %c0_9 = arith.constant 0 : index
    %9 = vector.load %arg5[%c0_8, %c0_9] : memref<32x1xf32, #tpu.memory_space<vmem>>, vector<32x1xf32>
    %10 = vector.broadcast %9 : vector<32x1xf32> to vector<32x128xf32>
    %11 = arith.addf %8, %10 : vector<32x128xf32>
    %12 = math.tanh %11 : vector<32x128xf32>
    %c0_10 = arith.constant 0 : index
    %c0_11 = arith.constant 0 : index
    %13 = vector.load %arg6[%c0_10, %c0_11] : memref<16x32xf32, #tpu.memory_space<vmem>>, vector<16x32xf32>
    %cst_12 = arith.constant dense<0.000000e+00> : vector<16x128xf32>
    %14 = tpu.matmul %13, %12, %cst_12 {dimension_numbers = #tpu.dot_dimension_numbers<[1], [0], [0], [1], [0, 0, 1, 1], [], []>} : vector<16x32xf32>, vector<32x128xf32>, vector<16x128xf32> -> vector<16x128xf32>
    %c0_13 = arith.constant 0 : index
    %c0_14 = arith.constant 0 : index
    %15 = vector.load %arg7[%c0_13, %c0_14] : memref<16x128xf32, #tpu.memory_space<vmem>>, vector<16x128xf32>
    tpu.vector_store %arg7[%c0_13, %c0_14], %14 {strides = array<i32>} : memref<16x128xf32, #tpu.memory_space<vmem>>, vector<16x128xf32>,
    return
  }
  func.func @transform_0(%arg0: i32) -> (i32, i32) {
    %c0_i32 = arith.constant 0 : i32
    %c0_i32_0 = arith.constant 0 : i32
    return %c0_i32, %arg0 : i32, i32
  }
  func.func @transform_1(%arg0: i32) -> (i32, i32) {
    %c0_i32 = arith.constant 0 : i32
    %c0_i32_0 = arith.constant 0 : i32
    %c0_i32_1 = arith.constant 0 : i32
    return %c0_i32, %c0_i32_0 : i32, i32
  }
  func.func @transform_2(%arg0: i32) -> (i32, i32) {
    %c0_i32 = arith.constant 0 : i32
    %c0_i32_0 = arith.constant 0 : i32
    %c0_i32_1 = arith.constant 0 : i32
    return %c0_i32, %c0_i32_0 : i32, i32
  }
  func.func @transform_3(%arg0: i32) -> (i32, i32) {
    %c0_i32 = arith.constant 0 : i32
    %c0_i32_0 = arith.constant 0 : i32
    %c0_i32_1 = arith.constant 0 : i32
    return %c0_i32, %c0_i32_0 : i32, i32
  }
  func.func @transform_4(%arg0: i32) -> (i32, i32) {
    %c0_i32 = arith.constant 0 : i32
    %c0_i32_0 = arith.constant 0 : i32
    %c0_i32_1 = arith.constant 0 : i32
    return %c0_i32, %c0_i32_0 : i32, i32
  }
  func.func @transform_5(%arg0: i32) -> (i32, i32) {
    %c0_i32 = arith.constant 0 : i32
    %c0_i32_0 = arith.constant 0 : i32
    %c0_i32_1 = arith.constant 0 : i32
    return %c0_i32, %c0_i32_0 : i32, i32
  }
  func.func @transform_6(%arg0: i32) -> (i32, i32) {
    %c0_i32 = arith.constant 0 : i32
    %c0_i32_0 = arith.constant 0 : i32
    return %c0_i32, %arg0 : i32, i32
  }
}

</mosaic_0001>

<llo_original>
// kernel: tpu_custom_call.1
$region0: #{tpu_custom_call.1}
  #allocation0 [shape = 'u32[]', space=smem, size = 0x4, offset = 0x4, fixed_abs, tag = 'smem constant byte address 0x4 - core index']
  #allocation1 [shape = 'u32[144,128]{1,0:T(1,128)}', space=vmem, size = 0x12000, scoped, tag = 'internal scratch']
  %s0 = inlined_call_operand.vmem [shape: f32[16,256], index: 0, kind: input, shape index: {}]
  %s1 = inlined_call_operand.vmem [shape: f32[32,16], index: 1, kind: input, shape index: {}]
  %s2 = inlined_call_operand.vmem [shape: f32[32,1], index: 2, kind: input, shape index: {}]
  %s3 = inlined_call_operand.vmem [shape: f32[32,32], index: 3, kind: input, shape index: {}]
  %s4 = inlined_call_operand.vmem [shape: f32[32,1], index: 4, kind: input, shape index: {}]
  %s5 = inlined_call_operand.vmem [shape: f32[16,32], index: 5, kind: input, shape index: {}]
  %s6 = inlined_call_operand.hbm [shape: f32[16,256], index: 6, kind: output, shape index: {}]
  %s7 = sld [smem:[#allocation0]]
  $region95: #{tpu_custom_call.1} parent=0
    _
  %s9 = ssub.s32 1, %s7
  %s10 = scalar_select 0, %s9, %s7
  $region1: #{tpu_custom_call.1} parent=0
    #allocation2 [shape = 'u8[16384]{0}', space=vmem, size = 0x4000, scoped, tag = 'input window, operand 0']
    #allocation3 [shape = 'u8[16384]{0}', space=vmem, size = 0x4000, scoped, tag = 'output window, operand 0']
    #allocation4 [shape = 's32[2]{0}', space=sflag, size = 0x8, scoped, tag = 'scoped memory for tpu_custom_call.1']
    %11 = vsyncpa [#allocation4], 0
    %s12 = scalar_lea.sflag [#allocation4], 1
    %13 = vsyncpa %s12, 0
    loop: start=0, step=1, limit=4
    $region2: #{tpu_custom_call.1} parent=1 // loop_pre_header
      _
    $region3: #{tpu_custom_call.1} parent=1 // loop_header
      %s15 = sphi 0, %s19
      %p16 = scmp.ge.s32.totalorder %s15, 4
      %s25 = sphi 0, %s27
      %s28 = sphi 0, %s25
      %s29 = sphi 0, %s28
      %s45 = sphi 0, %s29
      %s49 = sphi 0, %s49
      %s51 = sphi 0, %s49
      %s52 = sphi 0, %s51
      %s66 = sphi 0, %s52
      %s70 = sphi 0, %s70
      %s72 = sphi 0, %s70
      %s73 = sphi 0, %s72
      %s87 = sphi 0, %s73
      %s91 = sphi 0, %s91
      %s93 = sphi 0, %s91
      %s94 = sphi 0, %s93
      %s108 = sphi 0, %s94
      %s112 = sphi 0, %s112
      %s114 = sphi 0, %s112
      %s115 = sphi 0, %s114
      %s129 = sphi 0, %s115
      %s133 = sphi 0, %s133
      %s135 = sphi 0, %s133
      %s136 = sphi 0, %s135
      %s150 = sphi 0, %s136
      %s156 = sphi 0, %s158
      %s159 = sphi 0, %s156
      %s160 = sphi 0, %s159
      %s176 = sphi 0, %s160
    $region4: #{tpu_custom_call.1} parent=1 // loop_header_branch
      %18 = sbr.rel (%p16) target = $region8
    $region5: #{tpu_custom_call.1} parent=1 // loop_body
      %s20 = ssub.s32 %s15, 1
      %s21 = ssub.s32 %s15, 2
      %s22 = sadd.s32 %s15, 1
      %s23 = ssub.s32 %s15, %s22
      %p24 = scmp.eq.s32.totalorder %s23, 0
      %s26 = sadd.s32 %s25, 1
      %s27 = scalar_select %p24, %s25, %s26
      %p30 = pneg %p24
      %p31 = scmp.eq.s32.totalorder %s15, 1
      %p32 = por %p30, %p31
      %p33 = scmp.ne.s32.totalorder %s25, %s28
      %p34 = scmp.eq.s32.totalorder %s15, 0
      %p35 = por %p33, %p34
      %p36 = scmp.ne.s32.totalorder %s25, %s28
      %p37 = scmp.eq.s32.totalorder %s20, 1
      %p38 = por %p36, %p37
      %p39 = scmp.ne.s32.totalorder %s28, %s29
      %p40 = scmp.eq.s32.totalorder %s20, 0
      %p41 = por %p39, %p40
      %p42 = scmp.ne.s32.totalorder %s28, %s29
      %p43 = scmp.eq.s32.totalorder %s21, 1
      %p44 = por %p42, %p43
      %p46 = scmp.ne.s32.totalorder %s29, %s45
      %p47 = scmp.eq.s32.totalorder %s21, 0
      %p48 = por %p46, %p47
      %s50 = sadd.s32 %s49, 1
      %p53 = scmp.eq.s32.totalorder %s15, 1
      %p54 = scmp.ne.s32.totalorder %s49, %s51
      %p55 = scmp.eq.s32.totalorder %s15, 0
      %p56 = por %p54, %p55
      %p57 = scmp.ne.s32.totalorder %s49, %s51
      %p58 = scmp.eq.s32.totalorder %s20, 1
      %p59 = por %p57, %p58
      %p60 = scmp.ne.s32.totalorder %s51, %s52
      %p61 = scmp.eq.s32.totalorder %s20, 0
      %p62 = por %p60, %p61
      %p63 = scmp.ne.s32.totalorder %s51, %s52
      %p64 = scmp.eq.s32.totalorder %s21, 1
      %p65 = por %p63, %p64
      %p67 = scmp.ne.s32.totalorder %s52, %s66
      %p68 = scmp.eq.s32.totalorder %s21, 0
      %p69 = por %p67, %p68
      %s71 = sadd.s32 %s70, 1
      %p74 = scmp.eq.s32.totalorder %s15, 1
      %p75 = scmp.ne.s32.totalorder %s70, %s72
      %p76 = scmp.eq.s32.totalorder %s15, 0
      %p77 = por %p75, %p76
      %p78 = scmp.ne.s32.totalorder %s70, %s72
      %p79 = scmp.eq.s32.totalorder %s20, 1
      %p80 = por %p78, %p79
      %p81 = scmp.ne.s32.totalorder %s72, %s73
      %p82 = scmp.eq.s32.totalorder %s20, 0
      %p83 = por %p81, %p82
      %p84 = scmp.ne.s32.totalorder %s72, %s73
      %p85 = scmp.eq.s32.totalorder %s21, 1
      %p86 = por %p84, %p85
      %p88 = scmp.ne.s32.totalorder %s73, %s87
      %p89 = scmp.eq.s32.totalorder %s21, 0
      %p90 = por %p88, %p89
      %s92 = sadd.s32 %s91, 1
      %p95 = scmp.eq.s32.totalorder %s15, 1
      %p96 = scmp.ne.s32.totalorder %s91, %s93
      %p97 = scmp.eq.s32.totalorder %s15, 0
      %p98 = por %p96, %p97
      %p99 = scmp.ne.s32.totalorder %s91, %s93
      %p100 = scmp.eq.s32.totalorder %s20, 1
      %p101 = por %p99, %p100
      %p102 = scmp.ne.s32.totalorder %s93, %s94
      %p103 = scmp.eq.s32.totalorder %s20, 0
      %p104 = por %p102, %p103
      %p105 = scmp.ne.s32.totalorder %s93, %s94
      %p106 = scmp.eq.s32.totalorder %s21, 1
      %p107 = por %p105, %p106
      %p109 = scmp.ne.s32.totalorder %s94, %s108
      %p110 = scmp.eq.s32.totalorder %s21, 0
      %p111 = por %p109, %p110
      %s113 = sadd.s32 %s112, 1
      %p116 = scmp.eq.s32.totalorder %s15, 1
      %p117 = scmp.ne.s32.totalorder %s112, %s114
      %p118 = scmp.eq.s32.totalorder %s15, 0
      %p119 = por %p117, %p118
      %p120 = scmp.ne.s32.totalorder %s112, %s114
      %p121 = scmp.eq.s32.totalorder %s20, 1
      %p122 = por %p120, %p121
      %p123 = scmp.ne.s32.totalorder %s114, %s115
      %p124 = scmp.eq.s32.totalorder %s20, 0
      %p125 = por %p123, %p124
      %p126 = scmp.ne.s32.totalorder %s114, %s115
      %p127 = scmp.eq.s32.totalorder %s21, 1
      %p128 = por %p126, %p127
      %p130 = scmp.ne.s32.totalorder %s115, %s129
      %p131 = scmp.eq.s32.totalorder %s21, 0
      %p132 = por %p130, %p131
      %s134 = sadd.s32 %s133, 1
      %p137 = scmp.eq.s32.totalorder %s15, 1
      %p138 = scmp.ne.s32.totalorder %s133, %s135
      %p139 = scmp.eq.s32.totalorder %s15, 0
      %p140 = por %p138, %p139
      %p141 = scmp.ne.s32.totalorder %s133, %s135
      %p142 = scmp.eq.s32.totalorder %s20, 1
      %p143 = por %p141, %p142
      %p144 = scmp.ne.s32.totalorder %s135, %s136
      %p145 = scmp.eq.s32.totalorder %s20, 0
      %p146 = por %p144, %p145
      %p147 = scmp.ne.s32.totalorder %s135, %s136
      %p148 = scmp.eq.s32.totalorder %s21, 1
      %p149 = por %p147, %p148
      %p151 = scmp.ne.s32.totalorder %s136, %s150
      %p152 = scmp.eq.s32.totalorder %s21, 0
      %p153 = por %p151, %p152
      %s154 = ssub.s32 %s15, %s22
      %p155 = scmp.eq.s32.totalorder %s154, 0
      %s157 = sadd.s32 %s156, 1
      %s158 = scalar_select %p155, %s156, %s157
      %p161 = pneg %p155
      %p162 = scmp.eq.s32.totalorder %s15, 1
      %p163 = por %p161, %p162
      %p164 = scmp.ne.s32.totalorder %s156, %s159
      %p165 = scmp.eq.s32.totalorder %s15, 0
      %p166 = por %p164, %p165
      %p167 = scmp.ne.s32.totalorder %s156, %s159
      %p168 = scmp.eq.s32.totalorder %s20, 1
      %p169 = por %p167, %p168
      %p170 = scmp.ne.s32.totalorder %s159, %s160
      %p171 = scmp.eq.s32.totalorder %s20, 0
      %p172 = por %p170, %p171
      %p173 = scmp.ne.s32.totalorder %s159, %s160
      %p174 = scmp.eq.s32.totalorder %s21, 1
      %p175 = por %p173, %p174
      %p177 = scmp.ne.s32.totalorder %s160, %s176
      %p178 = scmp.eq.s32.totalorder %s21, 0
      %p179 = por %p177, %p178
      %p180 = scmp.le.s32.totalorder 1, %s15
      %p181 = scmp.lt.s32.totalorder %s15, 3
      %p182 = pnand %p180, %p181
      %p183 = pneg %p182
      // Predicated region
      $region9: #{tpu_custom_call.1} parent=5 // pred_check
        _
      $region10: #{tpu_custom_call.1} parent=5 // pred_check_branch
        %185 = sbr.rel (%p182) target = $region12
      $region11: #{tpu_custom_call.1} parent=5 // pred_region
        %s186 = ssub.s32 %s15, 1
        // Predicated region
        $region13: #{tpu_custom_call.1} parent=11 // pred_check
          %p187 = pneg %p62
        $region14: #{tpu_custom_call.1} parent=11 // pred_check_branch
          %189 = sbr.rel (%p187) target = $region16
        $region15: #{tpu_custom_call.1} parent=11 // pred_region
          _
        $region16: #{tpu_custom_call.1} parent=11 // pred_fallthru
          _
        // Predicated region
        $region17: #{tpu_custom_call.1} parent=11 // pred_check
          %p190 = pneg %p83
        $region18: #{tpu_custom_call.1} parent=11 // pred_check_branch
          %192 = sbr.rel (%p190) target = $region20
        $region19: #{tpu_custom_call.1} parent=11 // pred_region
          _
        $region20: #{tpu_custom_call.1} parent=11 // pred_fallthru
          _
        // Predicated region
        $region21: #{tpu_custom_call.1} parent=11 // pred_check
          %p193 = pneg %p104
        $region22: #{tpu_custom_call.1} parent=11 // pred_check_branch
          %195 = sbr.rel (%p193) target = $region24
        $region23: #{tpu_custom_call.1} parent=11 // pred_region
          _
        $region24: #{tpu_custom_call.1} parent=11 // pred_fallthru
          _
        // Predicated region
        $region25: #{tpu_custom_call.1} parent=11 // pred_check
          %p196 = pneg %p125
        $region26: #{tpu_custom_call.1} parent=11 // pred_check_branch
          %198 = sbr.rel (%p196) target = $region28
        $region27: #{tpu_custom_call.1} parent=11 // pred_region
          _
        $region28: #{tpu_custom_call.1} parent=11 // pred_fallthru
          _
        // Predicated region
        $region29: #{tpu_custom_call.1} parent=11 // pred_check
          %p199 = pneg %p146
        $region30: #{tpu_custom_call.1} parent=11 // pred_check_branch
          %201 = sbr.rel (%p199) target = $region32
        $region31: #{tpu_custom_call.1} parent=11 // pred_region
          _
        $region32: #{tpu_custom_call.1} parent=11 // pred_fallthru
          _
      $region12: #{tpu_custom_call.1} parent=5 // pred_fallthru
        _
      %p202 = scmp.lt.s32.totalorder %s15, 2
      // Predicated region
      $region33: #{tpu_custom_call.1} parent=5 // pred_check
        %p203 = pneg %p202
      $region34: #{tpu_custom_call.1} parent=5 // pred_check_branch
        %205 = sbr.rel (%p203) target = $region36
      $region35: #{tpu_custom_call.1} parent=5 // pred_region
        // Predicated region
        $region37: #{tpu_custom_call.1} parent=35 // pred_check
          %p206 = pneg %p35
        $region38: #{tpu_custom_call.1} parent=35 // pred_check_branch
          %208 = sbr.rel (%p206) target = $region40
        $region39: #{tpu_custom_call.1} parent=35 // pred_region
          %s209 = sand.u32 %s25, 1
          %s210 = sand.u32 %s25, 1
          %s211 = smul.addr %s210, 16
          %s212 = scalar_lea.vmem [#allocation2], %s211
          %s213 = smul.addr %s15, 8
          %s214 = scalar_lea.vmem %s0, %s213
          // Predicated region
          $region41: #{tpu_custom_call.1} parent=39 // pred_check
            _
          $region42: #{tpu_custom_call.1} parent=39 // pred_check_branch
            %216 = sbr.rel (0) target = $region44
          $region43: #{tpu_custom_call.1} parent=39 // pred_region
            // Predicated region
            $region45: #{tpu_custom_call.1} parent=43 // pred_check
              _
            $region46: #{tpu_custom_call.1} parent=43 // pred_check_branch
              %218 = sbr.rel (0) target = $region48
            $region47: #{tpu_custom_call.1} parent=43 // pred_region
              // Predicated region
              $region60: #{tpu_custom_call.1} parent=47 // pred_check
                _
              $region61: #{tpu_custom_call.1} parent=47 // pred_check_branch
                %235 = sbr.rel (0) target = $region63
              $region62: #{tpu_custom_call.1} parent=47 // pred_region
                loop: start=0, step=1, limit=1
                $region64: #{tpu_custom_call.1} parent=62 // loop_pre_header
                  _
                $region65: #{tpu_custom_call.1} parent=62 // loop_header
                  %s237 = sphi 0, %s241
                  %p238 = scmp.ge.s32.totalorder %s237, 1
                  %s242 = sphi %s214, %s214
                  %s243 = sphi %s212, %s212
                $region66: #{tpu_custom_call.1} parent=62 // loop_header_branch
                  %240 = sbr.rel (%p238) target = $region70
                $region67: #{tpu_custom_call.1} parent=62 // loop_body
                  %v244 = vld [vmem:[%s242] sm:$0xff]
                  %245 = vst [vmem:[%s243] sm:$0xff] %v244
                  %v246 = vld [vmem:[%s242 + $0x10] sm:$0xff]
                  %247 = vst [vmem:[%s243 + $0x8] sm:$0xff] %v246
                $region68: #{tpu_custom_call.1} parent=62 // loop_footer
                  %s241 = sadd.s32 1, %s237
                $region69: #{tpu_custom_call.1} parent=62 // loop_footer_branch
                  %236 = sbr.rel target = $region65
                $region70: #{tpu_custom_call.1} parent=62 // loop_exit
                  _
              $region63: #{tpu_custom_call.1} parent=47 // pred_fallthru
                _
              // Predicated region
              $region71: #{tpu_custom_call.1} parent=47 // pred_check
                _
              $region72: #{tpu_custom_call.1} parent=47 // pred_check_branch
                %249 = sbr.rel target = $region74
              $region73: #{tpu_custom_call.1} parent=47 // pred_region
                _
              $region74: #{tpu_custom_call.1} parent=47 // pred_fallthru
                _
            $region48: #{tpu_custom_call.1} parent=43 // pred_fallthru
              _
            // Predicated region
            $region49: #{tpu_custom_call.1} parent=43 // pred_check
              _
            $region50: #{tpu_custom_call.1} parent=43 // pred_check_branch
              %220 = sbr.rel target = $region52
            $region51: #{tpu_custom_call.1} parent=43 // pred_region
              loop: start=0, step=1, limit=1
              $region53: #{tpu_custom_call.1} parent=51 // loop_pre_header
                _
              $region54: #{tpu_custom_call.1} parent=51 // loop_header
                %s223 = sphi 0, %s227
                %p224 = scmp.ge.s32.totalorder %s223, 1
                %s228 = sphi %s214, %s214
                %s229 = sphi %s212, %s212
              $region55: #{tpu_custom_call.1} parent=51 // loop_header_branch
                %226 = sbr.rel (%p224) target = $region59
              $region56: #{tpu_custom_call.1} parent=51 // loop_body
                %v230 = vld [vmem:[%s228] sm:$0xff]
                %231 = vst [vmem:[%s229] sm:$0xff] %v230
                %v232 = vld [vmem:[%s228 + $0x10] sm:$0xff]
                %233 = vst [vmem:[%s229 + $0x8] sm:$0xff] %v232
              $region57: #{tpu_custom_call.1} parent=51 // loop_footer
                %s227 = sadd.s32 1, %s223
              $region58: #{tpu_custom_call.1} parent=51 // loop_footer_branch
                %222 = sbr.rel target = $region54
              $region59: #{tpu_custom_call.1} parent=51 // loop_exit
                _
            $region52: #{tpu_custom_call.1} parent=43 // pred_fallthru
              _
          $region44: #{tpu_custom_call.1} parent=39 // pred_fallthru
            _
          %250 = vnop
        $region40: #{tpu_custom_call.1} parent=35 // pred_fallthru
          _
      $region36: #{tpu_custom_call.1} parent=5 // pred_fallthru
        _
      %p251 = scmp.le.s32.totalorder 1, %s15
      %p252 = scmp.lt.s32.totalorder %s15, 3
      %p253 = pnand %p251, %p252
      %p254 = pneg %p253
      // Predicated region
      $region75: #{tpu_custom_call.1} parent=5 // pred_check
        _
      $region76: #{tpu_custom_call.1} parent=5 // pred_check_branch
        %256 = sbr.rel (%p253) target = $region78
      $region77: #{tpu_custom_call.1} parent=5 // pred_region
        %s257 = ssub.s32 %s15, 1
        %s258 = sand.u32 %s28, 1
        %s259 = sand.u32 %s28, 1
        %s260 = smul.addr %s259, 16
        %s261 = scalar_lea.vmem [#allocation2], %s260
        // Predicated region
        $region79: #{tpu_custom_call.1} parent=77 // pred_check
          %p262 = pneg %p41
        $region80: #{tpu_custom_call.1} parent=77 // pred_check_branch
          %264 = sbr.rel (%p262) target = $region82
        $region81: #{tpu_custom_call.1} parent=77 // pred_region
          _
        $region82: #{tpu_custom_call.1} parent=77 // pred_fallthru
          _
        %s265 = sand.u32 %s28, 1
        %s266 = sand.u32 %s28, 1
        %s267 = smul.addr %s266, 16
        %s268 = scalar_lea.vmem [#allocation2], %s267
        %p269 = pneg %p41
        %p270 = pneg %p38
        %p271 = pneg %p62
        %p272 = pneg %p59
        %p273 = pneg %p83
        %p274 = pneg %p80
        %p275 = pneg %p104
        %p276 = pneg %p101
        %p277 = pneg %p125
        %p278 = pneg %p122
        %p279 = pneg %p146
        %p280 = pneg %p143
        %p281 = pneg %p172
        %p282 = pneg %p169
        %s283 = sand.u32 %s159, 1
        %s284 = scalar_lea.sflag [#allocation4], %s283
        %s285 = sand.u32 %s159, 1
        %s286 = smul.addr %s285, 16
        %s287 = scalar_lea.vmem [#allocation3], %s286
        %v288 = vld [vmem:[%s1] sm:$0xff]
        %v289 = vld [vmem:[%s1 + $0x8] sm:$0xff]
        %v290 = vld [vmem:[%s1 + $0x10] sm:$0xff]
        %v291 = vld [vmem:[%s1 + $0x18] sm:$0xff]
        %v292 = vld [vmem:[%s261] sm:$0xff]
        %v293 = vld [vmem:[%s261 + $0x8] sm:$0xff]
        %v294 = vld [vmem:[%s2] sm:$0xff]
        %v295 = vld [vmem:[%s2 + $0x8] sm:$0xff]
        %v296 = vld [vmem:[%s2 + $0x10] sm:$0xff]
        %v297 = vld [vmem:[%s2 + $0x18] sm:$0xff]
        %299 = vset.pattern.permute.xlu0 0
        %300 = vperm.xlu0 %299, %v294
        %v301 = vpop.permute.xlu0 %300
        %304 = vset.pattern.permute.xlu0 0
        %305 = vperm.xlu0 %304, %v295
        %v306 = vpop.permute.xlu0 %305
        %309 = vset.pattern.permute.xlu0 0
        %310 = vperm.xlu0 %309, %v296
        %v311 = vpop.permute.xlu0 %310
        %314 = vset.pattern.permute.xlu0 0
        %315 = vperm.xlu0 %314, %v297
        %v316 = vpop.permute.xlu0 %315
        %vm318 = vcmask 130048
        %v320 = vsel %vm318, %v288, 0
        %v323 = vsel %vm318, %v289, 0
        %v326 = vsel %vm318, %v290, 0
        %v329 = vsel %vm318, %v291, 0
        %331 = vmatprep.subr.mxu0 0.0
        %332 = vmatpush1.msra.mxu0 %v292
        %333 = vmatprep.subr.mxu0 0.0
        %334 = vmatpush1.msra.mxu0 %v293
        %335 = vmatprep.subr.mxu0 0.0
        %336 = vmatpush1.msra.mxu0 0.0
        %337 = vmatprep.subr.mxu0 0.0
        %338 = vmatpush1.msra.mxu0 0.0
        %339 = vmatprep.subr.mxu0 0.0
        %340 = vmatpush1.msra.mxu0 0.0
        %341 = vmatprep.subr.mxu0 0.0
        %342 = vmatpush1.msra.mxu0 0.0
        %343 = vmatprep.subr.mxu0 0.0
        %344 = vmatpush1.msra.mxu0 0.0
        %345 = vmatprep.subr.mxu0 0.0
        %346 = vmatpush1.msra.mxu0 0.0
        %347 = vmatprep.subr.mxu0 0.0
        %348 = vmatpush1.msra.mxu0 0.0
        %349 = vmatprep.subr.mxu0 0.0
        %350 = vmatpush1.msra.mxu0 0.0
        %351 = vmatprep.subr.mxu0 0.0
        %352 = vmatpush1.msra.mxu0 0.0
        %353 = vmatprep.subr.mxu0 0.0
        %354 = vmatpush1.msra.mxu0 0.0
        %355 = vmatprep.subr.mxu0 0.0
        %356 = vmatpush1.msra.mxu0 0.0
        %357 = vmatprep.subr.mxu0 0.0
        %358 = vmatpush1.msra.mxu0 0.0
        %359 = vmatprep.subr.mxu0 0.0
        %360 = vmatpush1.msra.mxu0 0.0
        %361 = vmatprep.subr.mxu0 0.0
        %362 = vmatpush1.msra.mxu0 0.0
        %363 = vmatprep.subr.mxu0 0.0
        %364 = vmatpush1.msra.mxu0 0.0
        %365 = vmatprep.subr.mxu0 0.0
        %366 = vmatpush1.msra.mxu0 0.0
        %367 = vmatprep.subr.mxu0 0.0
        %368 = vmatpush1.msra.mxu0 0.0
        %369 = vmatprep.subr.mxu0 0.0
        %370 = vmatpush1.msra.mxu0 0.0
        %371 = vmatprep.subr.mxu0 0.0
        %372 = vmatpush1.msra.mxu0 0.0
        %373 = vmatprep.subr.mxu0 0.0
        %374 = vmatpush1.msra.mxu0 0.0
        %375 = vmatprep.subr.mxu0 0.0
        %376 = vmatpush1.msra.mxu0 0.0
        %377 = vmatprep.subr.mxu0 0.0
        %378 = vmatpush1.msra.mxu0 0.0
        %379 = vmatprep.subr.mxu0 0.0
        %380 = vmatpush1.msra.mxu0 0.0
        %381 = vmatprep.subr.mxu0 0.0
        %382 = vmatpush1.msra.mxu0 0.0
        %383 = vmatprep.subr.mxu0 0.0
        %384 = vmatpush1.msra.mxu0 0.0
        %385 = vmatprep.subr.mxu0 0.0
        %386 = vmatpush1.msra.mxu0 0.0
        %387 = vmatprep.subr.mxu0 0.0
        %388 = vmatpush1.msra.mxu0 0.0
        %389 = vmatprep.subr.mxu0 0.0
        %390 = vmatpush1.msra.mxu0 0.0
        %391 = vmatprep.subr.mxu0 0.0
        %392 = vmatpush1.msra.mxu0 0.0
        %393 = vmatprep.subr.mxu0 0.0
        %394 = vmatpush1.msra.mxu0 0.0
        %395 = vmatprep.mubr.f32.mxu0 0.0
        %396 = vmatmul.mubr.f32.gmra.mrb[0].mxu0 %v320
        %v397 = vpop.f32.mrb[0].mxu0
        %v398 = vadd.f32 %v301, %v397
        %v399 = vpop.f32.mrb[0].mxu0
        %400 = vmatprep.mubr.f32.mxu0 0.0
        %401 = vmatmul.mubr.f32.gmra.mrb[0].mxu0 %v323
        %v402 = vpop.f32.mrb[0].mxu0
        %v403 = vadd.f32 %v306, %v402
        %v404 = vpop.f32.mrb[0].mxu0
        %405 = vmatprep.mubr.f32.mxu0 0.0
        %406 = vmatmul.mubr.f32.gmra.mrb[0].mxu0 %v326
        %v407 = vpop.f32.mrb[0].mxu0
        %v408 = vadd.f32 %v311, %v407
        %v409 = vpop.f32.mrb[0].mxu0
        %410 = vmatprep.mubr.f32.mxu0 0.0
        %411 = vmatmul.mubr.f32.gmra.mrb[0].mxu0 %v329
        %v412 = vpop.f32.mrb[0].mxu0
        %v413 = vadd.f32 %v316, %v412
        %v414 = vpop.f32.mrb[0].mxu0
        %415 = vdwg.mxu0
        %v416 = vtanh.pop %v398
        %v417 = vtanh.pop %v403
        %v418 = vtanh.pop %v408
        %v419 = vtanh.pop %v413
        %v420 = vld [vmem:[%s3] sm:$0xff]
        %v421 = vld [vmem:[%s3 + $0x8] sm:$0xff]
        %v422 = vld [vmem:[%s3 + $0x10] sm:$0xff]
        %v423 = vld [vmem:[%s3 + $0x18] sm:$0xff]
        %v424 = vld [vmem:[%s4] sm:$0xff]
        %v425 = vld [vmem:[%s4 + $0x8] sm:$0xff]
        %v426 = vld [vmem:[%s4 + $0x10] sm:$0xff]
        %v427 = vld [vmem:[%s4 + $0x18] sm:$0xff]
        %429 = vset.pattern.permute.xlu0 0
        %430 = vperm.xlu0 %429, %v424
        %v431 = vpop.permute.xlu0 %430
        %434 = vset.pattern.permute.xlu0 0
        %435 = vperm.xlu0 %434, %v425
        %v436 = vpop.permute.xlu0 %435
        %439 = vset.pattern.permute.xlu0 0
        %440 = vperm.xlu0 %439, %v426
        %v441 = vpop.permute.xlu0 %440
        %444 = vset.pattern.permute.xlu0 0
        %445 = vperm.xlu0 %444, %v427
        %v446 = vpop.permute.xlu0 %445
        %vm448 = vcmask 261120
        %v450 = vsel %vm448, %v420, 0
        %v453 = vsel %vm448, %v421, 0
        %v456 = vsel %vm448, %v422, 0
        %v459 = vsel %vm448, %v423, 0
        %461 = vmatprep.subr.mxu0 0.0
        %462 = vmatpush1.msra.mxu0 %v416
        %463 = vmatprep.subr.mxu0 0.0
        %464 = vmatpush1.msra.mxu0 %v417
        %465 = vmatprep.subr.mxu0 0.0
        %466 = vmatpush1.msra.mxu0 %v418
        %467 = vmatprep.subr.mxu0 0.0
        %468 = vmatpush1.msra.mxu0 %v419
        %469 = vmatprep.subr.mxu0 0.0
        %470 = vmatpush1.msra.mxu0 0.0
        %471 = vmatprep.subr.mxu0 0.0
        %472 = vmatpush1.msra.mxu0 0.0
        %473 = vmatprep.subr.mxu0 0.0
        %474 = vmatpush1.msra.mxu0 0.0
        %475 = vmatprep.subr.mxu0 0.0
        %476 = vmatpush1.msra.mxu0 0.0
        %477 = vmatprep.subr.mxu0 0.0
        %478 = vmatpush1.msra.mxu0 0.0
        %479 = vmatprep.subr.mxu0 0.0
        %480 = vmatpush1.msra.mxu0 0.0
        %481 = vmatprep.subr.mxu0 0.0
        %482 = vmatpush1.msra.mxu0 0.0
        %483 = vmatprep.subr.mxu0 0.0
        %484 = vmatpush1.msra.mxu0 0.0
        %485 = vmatprep.subr.mxu0 0.0
        %486 = vmatpush1.msra.mxu0 0.0
        %487 = vmatprep.subr.mxu0 0.0
        %488 = vmatpush1.msra.mxu0 0.0
        %489 = vmatprep.subr.mxu0 0.0
        %490 = vmatpush1.msra.mxu0 0.0
        %491 = vmatprep.subr.mxu0 0.0
        %492 = vmatpush1.msra.mxu0 0.0
        %493 = vmatprep.subr.mxu0 0.0
        %494 = vmatpush1.msra.mxu0 0.0
        %495 = vmatprep.subr.mxu0 0.0
        %496 = vmatpush1.msra.mxu0 0.0
        %497 = vmatprep.subr.mxu0 0.0
        %498 = vmatpush1.msra.mxu0 0.0
        %499 = vmatprep.subr.mxu0 0.0
        %500 = vmatpush1.msra.mxu0 0.0
        %501 = vmatprep.subr.mxu0 0.0
        %502 = vmatpush1.msra.mxu0 0.0
        %503 = vmatprep.subr.mxu0 0.0
        %504 = vmatpush1.msra.mxu0 0.0
        %505 = vmatprep.subr.mxu0 0.0
        %506 = vmatpush1.msra.mxu0 0.0
        %507 = vmatprep.subr.mxu0 0.0
        %508 = vmatpush1.msra.mxu0 0.0
        %509 = vmatprep.subr.mxu0 0.0
        %510 = vmatpush1.msra.mxu0 0.0
        %511 = vmatprep.subr.mxu0 0.0
        %512 = vmatpush1.msra.mxu0 0.0
        %513 = vmatprep.subr.mxu0 0.0
        %514 = vmatpush1.msra.mxu0 0.0
        %515 = vmatprep.subr.mxu0 0.0
        %516 = vmatpush1.msra.mxu0 0.0
        %517 = vmatprep.subr.mxu0 0.0
        %518 = vmatpush1.msra.mxu0 0.0
        %519 = vmatprep.subr.mxu0 0.0
        %520 = vmatpush1.msra.mxu0 0.0
        %521 = vmatprep.subr.mxu0 0.0
        %522 = vmatpush1.msra.mxu0 0.0
        %523 = vmatprep.subr.mxu0 0.0
        %524 = vmatpush1.msra.mxu0 0.0
        %525 = vmatprep.mubr.f32.mxu0 0.0
        %526 = vmatmul.mubr.f32.gmra.mrb[0].mxu0 %v450
        %v527 = vpop.f32.mrb[0].mxu0
        %v528 = vadd.f32 %v431, %v527
        %v529 = vpop.f32.mrb[0].mxu0
        %530 = vmatprep.mubr.f32.mxu0 0.0
        %531 = vmatmul.mubr.f32.gmra.mrb[0].mxu0 %v453
        %v532 = vpop.f32.mrb[0].mxu0
        %v533 = vadd.f32 %v436, %v532
        %v534 = vpop.f32.mrb[0].mxu0
        %535 = vmatprep.mubr.f32.mxu0 0.0
        %536 = vmatmul.mubr.f32.gmra.mrb[0].mxu0 %v456
        %v537 = vpop.f32.mrb[0].mxu0
        %v538 = vadd.f32 %v441, %v537
        %v539 = vpop.f32.mrb[0].mxu0
        %540 = vmatprep.mubr.f32.mxu0 0.0
        %541 = vmatmul.mubr.f32.gmra.mrb[0].mxu0 %v459
        %v542 = vpop.f32.mrb[0].mxu0
        %v543 = vadd.f32 %v446, %v542
        %v544 = vpop.f32.mrb[0].mxu0
        %545 = vdwg.mxu0
        %v546 = vtanh.pop %v528
        %v547 = vtanh.pop %v533
        %v548 = vtanh.pop %v538
        %v549 = vtanh.pop %v543
        %v550 = vld [vmem:[%s5] sm:$0xff]
        %v551 = vld [vmem:[%s5 + $0x8] sm:$0xff]
        %v553 = vsel %vm448, %v550, 0
        %v556 = vsel %vm448, %v551, 0
        %558 = vmatprep.subr.mxu0 0.0
        %559 = vmatpush1.msra.mxu0 %v546
        %560 = vmatprep.subr.mxu0 0.0
        %561 = vmatpush1.msra.mxu0 %v547
        %562 = vmatprep.subr.mxu0 0.0
        %563 = vmatpush1.msra.mxu0 %v548
        %564 = vmatprep.subr.mxu0 0.0
        %565 = vmatpush1.msra.mxu0 %v549
        %566 = vmatprep.subr.mxu0 0.0
        %567 = vmatpush1.msra.mxu0 0.0
        %568 = vmatprep.subr.mxu0 0.0
        %569 = vmatpush1.msra.mxu0 0.0
        %570 = vmatprep.subr.mxu0 0.0
        %571 = vmatpush1.msra.mxu0 0.0
        %572 = vmatprep.subr.mxu0 0.0
        %573 = vmatpush1.msra.mxu0 0.0
        %574 = vmatprep.subr.mxu0 0.0
        %575 = vmatpush1.msra.mxu0 0.0
        %576 = vmatprep.subr.mxu0 0.0
        %577 = vmatpush1.msra.mxu0 0.0
        %578 = vmatprep.subr.mxu0 0.0
        %579 = vmatpush1.msra.mxu0 0.0
        %580 = vmatprep.subr.mxu0 0.0
        %581 = vmatpush1.msra.mxu0 0.0
        %582 = vmatprep.subr.mxu0 0.0
        %583 = vmatpush1.msra.mxu0 0.0
        %584 = vmatprep.subr.mxu0 0.0
        %585 = vmatpush1.msra.mxu0 0.0
        %586 = vmatprep.subr.mxu0 0.0
        %587 = vmatpush1.msra.mxu0 0.0
        %588 = vmatprep.subr.mxu0 0.0
        %589 = vmatpush1.msra.mxu0 0.0
        %590 = vmatprep.subr.mxu0 0.0
        %591 = vmatpush1.msra.mxu0 0.0
        %592 = vmatprep.subr.mxu0 0.0
        %593 = vmatpush1.msra.mxu0 0.0
        %594 = vmatprep.subr.mxu0 0.0
        %595 = vmatpush1.msra.mxu0 0.0
        %596 = vmatprep.subr.mxu0 0.0
        %597 = vmatpush1.msra.mxu0 0.0
        %598 = vmatprep.subr.mxu0 0.0
        %599 = vmatpush1.msra.mxu0 0.0
        %600 = vmatprep.subr.mxu0 0.0
        %601 = vmatpush1.msra.mxu0 0.0
        %602 = vmatprep.subr.mxu0 0.0
        %603 = vmatpush1.msra.mxu0 0.0
        %604 = vmatprep.subr.mxu0 0.0
        %605 = vmatpush1.msra.mxu0 0.0
        %606 = vmatprep.subr.mxu0 0.0
        %607 = vmatpush1.msra.mxu0 0.0
        %608 = vmatprep.subr.mxu0 0.0
        %609 = vmatpush1.msra.mxu0 0.0
        %610 = vmatprep.subr.mxu0 0.0
        %611 = vmatpush1.msra.mxu0 0.0
        %612 = vmatprep.subr.mxu0 0.0
        %613 = vmatpush1.msra.mxu0 0.0
        %614 = vmatprep.subr.mxu0 0.0
        %615 = vmatpush1.msra.mxu0 0.0
        %616 = vmatprep.subr.mxu0 0.0
        %617 = vmatpush1.msra.mxu0 0.0
        %618 = vmatprep.subr.mxu0 0.0
        %619 = vmatpush1.msra.mxu0 0.0
        %620 = vmatprep.subr.mxu0 0.0
        %621 = vmatpush1.msra.mxu0 0.0
        %622 = vmatprep.mubr.f32.mxu0 0.0
        %623 = vmatmul.mubr.f32.gmra.mrb[0].mxu0 %v553
        %v624 = vpop.f32.mrb[0].mxu0
        %v625 = vadd.f32 0.0, %v624
        %v626 = vpop.f32.mrb[0].mxu0
        %627 = vmatprep.mubr.f32.mxu0 0.0
        %628 = vmatmul.mubr.f32.gmra.mrb[0].mxu0 %v556
        %v629 = vpop.f32.mrb[0].mxu0
        %v630 = vadd.f32 0.0, %v629
        %v631 = vpop.f32.mrb[0].mxu0
        %632 = vdwg.mxu0
        %633 = vst [vmem:[%s287] sm:$0xff] %v625
        %634 = vst [vmem:[%s287 + $0x8] sm:$0xff] %v630
        %s635 = sand.u32 %s159, 1
        %s636 = scalar_lea.sflag [#allocation4], %s635
        %s637 = sand.u32 %s159, 1
        %s638 = smul.addr %s637, 16
        %s639 = scalar_lea.vmem [#allocation3], %s638
        // Predicated region
        $region83: #{tpu_custom_call.1} parent=77 // pred_check
          %p640 = pneg %p169
        $region84: #{tpu_custom_call.1} parent=77 // pred_check_branch
          %642 = sbr.rel (%p640) target = $region86
        $region85: #{tpu_custom_call.1} parent=77 // pred_region
          %s644 = ssub.s32 256, 256
          %645 = vsyncadd %s636, %s644
          %s646 = smul.addr %s20, 128
          %s647 = scalar_lea.hbm %s6, %s646
          %s648 = sshll.u32 %s639, 4
          %s649 = int_to_ptr.vmem [resolvable:$true] %s648
          %654 = dma.vmem_to_hbm [thread:$0]  %s649, 256, %s647, %s636, 128, 256, 8
        $region86: #{tpu_custom_call.1} parent=77 // pred_fallthru
          _
      $region78: #{tpu_custom_call.1} parent=5 // pred_fallthru
        _
      %p655 = scmp.le.s32.totalorder 2, %s15
      // Predicated region
      $region87: #{tpu_custom_call.1} parent=5 // pred_check
        %p656 = pneg %p655
      $region88: #{tpu_custom_call.1} parent=5 // pred_check_branch
        %658 = sbr.rel (%p656) target = $region90
      $region89: #{tpu_custom_call.1} parent=5 // pred_region
        %s659 = ssub.s32 %s15, 2
        // Predicated region
        $region91: #{tpu_custom_call.1} parent=89 // pred_check
          %p660 = pneg %p175
        $region92: #{tpu_custom_call.1} parent=89 // pred_check_branch
          %662 = sbr.rel (%p660) target = $region94
        $region93: #{tpu_custom_call.1} parent=89 // pred_region
          %s663 = sand.u32 %s160, 1
          %s664 = scalar_lea.sflag [#allocation4], %s663
          %s665 = sand.u32 %s160, 1
          %s666 = smul.addr %s665, 16
          %s667 = scalar_lea.vmem [#allocation3], %s666
          %668 = dma.done %s664, 256
        $region94: #{tpu_custom_call.1} parent=89 // pred_fallthru
          _
      $region90: #{tpu_custom_call.1} parent=5 // pred_fallthru
        _
    $region6: #{tpu_custom_call.1} parent=1 // loop_footer
      %s19 = sadd.s32 1, %s15
    $region7: #{tpu_custom_call.1} parent=1 // loop_footer_branch
      %14 = sbr.rel target = $region3
    $region8: #{tpu_custom_call.1} parent=1 // loop_exit
      _
    %669 = vsyncpa [#allocation4], 1
    %s670 = scalar_lea.sflag [#allocation4], 1
    %671 = vsyncpa %s670, 1

</llo_original>
